<compile_context>
chip_gen: v6e
topology: v6e:2x2x1
jax: 0.10.0
libtpu: 0.0.40
codegen_flags: <defaults>
</compile_context>

<pallas_src>
import functools

import jax
import jax.numpy as jnp
from jax.experimental import pallas as pl
from jax.experimental.pallas import tpu as pltpu


def _rup(a, m):
    return (a + m - 1) // m * m


def qnet_kernel(x_ref, slab_ref, q_ref, *, S, H, A, offs, dueling):
    x = x_ref[...].astype(jnp.float32)

    # Static slices of the packed parameter slab (all row offsets 8-aligned).
    w1 = slab_ref[offs["w1"]:offs["w1"] + S, 0:H]
    b1 = slab_ref[offs["b1"]:offs["b1"] + 1, 0:H]
    w2 = slab_ref[offs["w2"]:offs["w2"] + H, 0:H]
    b2 = slab_ref[offs["b2"]:offs["b2"] + 1, 0:H]
    wh = slab_ref[offs["wh"]:offs["wh"] + H, :]      # [H, 128] fused heads
    bh = slab_ref[offs["bh"]:offs["bh"] + 1, :]      # [1, 128]

    # Trunk: linear -> relu -> linear -> relu  (f32 MXU accumulation).
    h1 = jnp.maximum(jnp.dot(x, w1, preferred_element_type=jnp.float32) + b1, 0.0)
    h2 = jnp.maximum(jnp.dot(h1, w2, preferred_element_type=jnp.float32) + b2, 0.0)

    # Fused heads: one [block_b, H] x [H, 128] matmul.
    # lanes 0..A-1 = action values, lane A = state value (dueling), lanes >A = 0.
    heads = jnp.dot(h2, wh, preferred_element_type=jnp.float32) + bh

    col = jax.lax.broadcasted_iota(jnp.int32, heads.shape, 1)
    act_mask = col < A

    if dueling:
        a_only = jnp.where(act_mask, heads, 0.0)
        mean_a = jnp.sum(a_only, axis=-1, keepdims=True) * (1.0 / A)
        v = jnp.sum(jnp.where(col == A, heads, 0.0), axis=-1, keepdims=True)
        q = jnp.where(act_mask, heads + (v - mean_a), 0.0)
    else:
        q = jnp.where(act_mask, heads, 0.0)

    # Lane-dense [block_b, 128] store; wrapper slices the first A lanes.
    q_ref[...] = q
    # TODO(synk): other create_layer layer_types (noisy/dueling-noisy etc.) not
    # implemented; this covers the plain linear+relu trunk configuration.


def _pack_slab(params, n_actions, dueling):
    """Pack all weights/biases into one [R, 128] f32 slab (8-aligned sections)."""
    w1, b1, w2, b2, wv, bv, wa, ba = params
    S, H = w1.shape
    assert H <= 128 and n_actions + 1 <= 128

    offs, r = {}, 0
    offs["w1"] = r; r = _rup(r + S, 8)
    offs["b1"] = r; r += 8
    offs["w2"] = r; r = _rup(r + H, 8)
    offs["b2"] = r; r += 8
    offs["wh"] = r; r = _rup(r + H, 8)
    offs["bh"] = r; r += 8
    R = _rup(r, 8)

    slab = jnp.zeros((R, 128), jnp.float32)
    slab = slab.at[offs["w1"]:offs["w1"] + S, 0:H].set(w1)
    slab = slab.at[offs["b1"], 0:H].set(b1[0])
    slab = slab.at[offs["w2"]:offs["w2"] + H, 0:H].set(w2)
    slab = slab.at[offs["b2"], 0:H].set(b2[0])
    slab = slab.at[offs["wh"]:offs["wh"] + H, 0:n_actions].set(wa)
    slab = slab.at[offs["bh"], 0:n_actions].set(ba[0])
    if dueling:
        slab = slab.at[offs["wh"]:offs["wh"] + H, n_actions].set(wv[:, 0])
        slab = slab.at[offs["bh"], n_actions].set(bv[0, 0])
    return slab, offs, S, H


def qnetwork_forward(x, params, *, dueling, block_b=None):
    """Returns q_value [B, n_actions]."""
    n_actions = params[6].shape[1]          # wa: [H, A]
    slab, offs, S, H = _pack_slab(params, n_actions, dueling)
    R = slab.shape[0]

    B = x.shape[0]
    if block_b is None:
        block_b = min(256, _rup(B, 8))      # rows per grid step (multiple of 8)
    B_pad = _rup(B, block_b)
    if B_pad != B:
        x = jnp.pad(x, ((0, B_pad - B), (0, 0)))

    kernel = functools.partial(qnet_kernel, S=S, H=H, A=n_actions,
                               offs=offs, dueling=dueling)

    q_full = pl.pallas_call(
        kernel,
        grid=(B_pad // block_b,),
        in_specs=[
            pl.BlockSpec((block_b, S), lambda i: (i, 0), memory_space=pltpu.VMEM),
            # constant index_map -> weight slab stays VMEM-resident across steps
            pl.BlockSpec((R, 128), lambda i: (0, 0), memory_space=pltpu.VMEM),
        ],
        out_specs=pl.BlockSpec((block_b, 128), lambda i: (i, 0),
                               memory_space=pltpu.VMEM),
        out_shape=jax.ShapeDtypeStruct((B_pad, 128), jnp.float32),
        compiler_params=pltpu.CompilerParams(dimension_semantics=("parallel",)),
    )(x, slab)

    return q_full[:B, :n_actions]


def init_params(key, state_size, hidden, n_actions):
    ks = jax.random.split(key, 4)

    def linear(k, fan_in, fan_out):
        # deterministic, PyTorch-nn.Linear-like uniform init
        bound = 1.0 / jnp.sqrt(fan_in)
        kw, kb = jax.random.split(k)
        w = jax.random.uniform(kw, (fan_in, fan_out), jnp.float32, -bound, bound)
        b = jax.random.uniform(kb, (1, fan_out), jnp.float32, -bound, bound)
        return w, b

    w1, b1 = linear(ks[0], state_size, hidden)
    w2, b2 = linear(ks[1], hidden, hidden)
    wv, bv = linear(ks[2], hidden, 1)          # state_value_layer (dueling)
    wa, ba = linear(ks[3], hidden, n_actions)  # action_value_layer
    return (w1, b1, w2, b2, wv, bv, wa, ba)


if __name__ == "__main__":
    key = jax.random.PRNGKey(0)
    B, state_size, hidden, n_actions = 8, 16, 32, 4

    kx, kp = jax.random.split(key)
    x = jax.random.normal(kx, (B, state_size), jnp.float32)
    params = init_params(kp, state_size, hidden, n_actions)
    w1, b1, w2, b2, wv, bv, wa, ba = params

    # reference trunk in plain JAX
    h1 = jnp.maximum(x @ w1 + b1, 0.0)
    h2 = jnp.maximum(h1 @ w2 + b2, 0.0)

    for dueling in (True, False):
        q = qnetwork_forward(x, params, dueling=dueling)
        jax.block_until_ready(q)

        if dueling:
            sv = h2 @ wv + bv
            av = h2 @ wa + ba
            q_ref = sv + av - av.mean(axis=1, keepdims=True)
        else:
            q_ref = h2 @ wa + ba

        assert q.shape == (B, n_actions)
        assert jnp.allclose(q, q_ref, atol=1e-4), f"mismatch (dueling={dueling})"

    print("KERNEL_OK")
</pallas_src>

<mosaic_0001>
module attributes {stable_mosaic.version = 11 : i64} {
  func.func @qnet_kernel(%arg0: i32, %arg1: memref<8x16xf32, #tpu.memory_space<vmem>>, %arg2: memref<104x128xf32, #tpu.memory_space<vmem>>, %arg3: memref<8x128xf32, #tpu.memory_space<vmem>>) attributes {dimension_semantics = [#tpu.dimension_semantics<parallel>], iteration_bounds = array<i64: 1>, scalar_prefetch = 0 : i64, scratch_operands = 0 : i64, tpu.core_type = #tpu.core_type<tc>, window_params = [{transform_indices = @transform_0, window_bounds = array<i64: 8, 16>}, {pipeline_mode = #tpu.pipeline_mode<synchronous>, transform_indices = @transform_1, window_bounds = array<i64: 104, 128>}, {transform_indices = @transform_2, window_bounds = array<i64: 8, 128>}]} {
    %c0 = arith.constant 0 : index
    %c0_0 = arith.constant 0 : index
    %0 = vector.load %arg1[%c0, %c0_0] : memref<8x16xf32, #tpu.memory_space<vmem>>, vector<8x16xf32>
    %c0_1 = arith.constant 0 : index
    %c0_2 = arith.constant 0 : index
    %1 = vector.load %arg2[%c0_1, %c0_2] : memref<104x128xf32, #tpu.memory_space<vmem>>, vector<16x32xf32>
    %c16 = arith.constant 16 : index
    %c0_3 = arith.constant 0 : index
    %2 = vector.load %arg2[%c16, %c0_3] : memref<104x128xf32, #tpu.memory_space<vmem>>, vector<1x32xf32>
    %c24 = arith.constant 24 : index
    %c0_4 = arith.constant 0 : index
    %3 = vector.load %arg2[%c24, %c0_4] : memref<104x128xf32, #tpu.memory_space<vmem>>, vector<32x32xf32>
    %c56 = arith.constant 56 : index
    %c0_5 = arith.constant 0 : index
    %4 = vector.load %arg2[%c56, %c0_5] : memref<104x128xf32, #tpu.memory_space<vmem>>, vector<1x32xf32>
    %c64 = arith.constant 64 : index
    %c0_6 = arith.constant 0 : index
    %5 = vector.load %arg2[%c64, %c0_6] : memref<104x128xf32, #tpu.memory_space<vmem>>, vector<32x128xf32>
    %c96 = arith.constant 96 : index
    %c0_7 = arith.constant 0 : index
    %6 = vector.load %arg2[%c96, %c0_7] : memref<104x128xf32, #tpu.memory_space<vmem>>, vector<1x128xf32>
    %cst = arith.constant dense<0.000000e+00> : vector<8x32xf32>
    %7 = tpu.matmul %0, %1, %cst {dimension_numbers = #tpu.dot_dimension_numbers<[1], [0], [0], [1], [0, 0, 1, 1], [], []>} : vector<8x16xf32>, vector<16x32xf32>, vector<8x32xf32> -> vector<8x32xf32>
    %8 = vector.broadcast %2 : vector<1x32xf32> to vector<8x32xf32>
    %9 = arith.addf %7, %8 : vector<8x32xf32>
    %cst_8 = arith.constant 0.000000e+00 : f32
    %10 = vector.broadcast %cst_8 : f32 to vector<8x32xf32>
    %11 = arith.maximumf %9, %10 : vector<8x32xf32>
    %cst_9 = arith.constant dense<0.000000e+00> : vector<8x32xf32>
    %12 = tpu.matmul %11, %3, %cst_9 {dimension_numbers = #tpu.dot_dimension_numbers<[1], [0], [0], [1], [0, 0, 1, 1], [], []>} : vector<8x32xf32>, vector<32x32xf32>, vector<8x32xf32> -> vector<8x32xf32>
    %13 = vector.broadcast %4 : vector<1x32xf32> to vector<8x32xf32>
    %14 = arith.addf %12, %13 : vector<8x32xf32>
    %cst_10 = arith.constant 0.000000e+00 : f32
    %15 = vector.broadcast %cst_10 : f32 to vector<8x32xf32>
    %16 = arith.maximumf %14, %15 : vector<8x32xf32>
    %cst_11 = arith.constant dense<0.000000e+00> : vector<8x128xf32>
    %17 = tpu.matmul %16, %5, %cst_11 {dimension_numbers = #tpu.dot_dimension_numbers<[1], [0], [0], [1], [0, 0, 1, 1], [], []>} : vector<8x32xf32>, vector<32x128xf32>, vector<8x128xf32> -> vector<8x128xf32>
    %18 = vector.broadcast %6 : vector<1x128xf32> to vector<8x128xf32>
    %19 = arith.addf %17, %18 : vector<8x128xf32>
    %20 = tpu.iota {dimensions = array<i32: 1>} : vector<8x128xi32>
    %c4_i32 = arith.constant 4 : i32
    %21 = vector.broadcast %c4_i32 : i32 to vector<8x128xi32>
    %22 = arith.cmpi slt, %20, %21 : vector<8x128xi32>
    %cst_12 = arith.constant 0.000000e+00 : f32
    %23 = vector.broadcast %cst_12 : f32 to vector<8x128xf32>
    %24 = arith.select %22, %19, %23 : vector<8x128xi1>, vector<8x128xf32>
    %cst_13 = arith.constant dense<0.000000e+00> : vector<8xf32>
    %25 = vector.multi_reduction <add>, %24, %cst_13 [1] : vector<8x128xf32> to vector<8xf32>
    %26 = vector.shape_cast %25 : vector<8xf32> to vector<8x1xf32>
    %cst_14 = arith.constant 2.500000e-01 : f32
    %27 = vector.broadcast %cst_14 : f32 to vector<8x1xf32>
    %28 = arith.mulf %26, %27 : vector<8x1xf32>
    %c4_i32_15 = arith.constant 4 : i32
    %29 = vector.broadcast %c4_i32_15 : i32 to vector<8x128xi32>
    %30 = arith.cmpi eq, %20, %29 : vector<8x128xi32>
    %cst_16 = arith.constant 0.000000e+00 : f32
    %31 = vector.broadcast %cst_16 : f32 to vector<8x128xf32>
    %32 = arith.select %30, %19, %31 : vector<8x128xi1>, vector<8x128xf32>
    %cst_17 = arith.constant dense<0.000000e+00> : vector<8xf32>
    %33 = vector.multi_reduction <add>, %32, %cst_17 [1] : vector<8x128xf32> to vector<8xf32>
    %34 = vector.shape_cast %33 : vector<8xf32> to vector<8x1xf32>
    %35 = arith.subf %34, %28 : vector<8x1xf32>
    %36 = vector.broadcast %35 : vector<8x1xf32> to vector<8x128xf32>
    %37 = arith.addf %19, %36 : vector<8x128xf32>
    %cst_18 = arith.constant 0.000000e+00 : f32
    %38 = vector.broadcast %cst_18 : f32 to vector<8x128xf32>
    %39 = arith.select %22, %37, %38 : vector<8x128xi1>, vector<8x128xf32>
    %c0_19 = arith.constant 0 : index
    %c0_20 = arith.constant 0 : index
    %40 = vector.load %arg3[%c0_19, %c0_20] : memref<8x128xf32, #tpu.memory_space<vmem>>, vector<8x128xf32>
    tpu.vector_store %arg3[%c0_19, %c0_20], %39 {strides = array<i32>} : memref<8x128xf32, #tpu.memory_space<vmem>>, vector<8x128xf32>,
    return
  }
  func.func @transform_0(%arg0: i32) -> (i32, i32) {
    %c0_i32 = arith.constant 0 : i32
    %c0_i32_0 = arith.constant 0 : i32
    return %arg0, %c0_i32 : i32, i32
  }
  func.func @transform_1(%arg0: i32) -> (i32, i32) {
    %c0_i32 = arith.constant 0 : i32
    %c0_i32_0 = arith.constant 0 : i32
    %c0_i32_1 = arith.constant 0 : i32
    return %c0_i32, %c0_i32_0 : i32, i32
  }
  func.func @transform_2(%arg0: i32) -> (i32, i32) {
    %c0_i32 = arith.constant 0 : i32
    %c0_i32_0 = arith.constant 0 : i32
    return %arg0, %c0_i32 : i32, i32
  }
}

</mosaic_0001>

<llo_original>
// kernel: tpu_custom_call.1
$region0: #{tpu_custom_call.1}
  #allocation0 [shape = 'u32[]', space=smem, size = 0x4, offset = 0x4, fixed_abs, tag = 'smem constant byte address 0x4 - core index']
  #allocation1 [shape = 'u32[144,128]{1,0:T(1,128)}', space=vmem, size = 0x12000, scoped, tag = 'internal scratch']
  %s0 = inlined_call_operand.hbm [shape: f32[8,16], index: 0, kind: input, shape index: {}]
  %s1 = inlined_call_operand.hbm [shape: f32[104,128], index: 1, kind: input, shape index: {}]
  %s2 = inlined_call_operand.hbm [shape: f32[8,128], index: 2, kind: output, shape index: {}]
  %s3 = sld [smem:[#allocation0]]
  $region26: #{tpu_custom_call.1} parent=0
    _
  %s5 = ssub.s32 1, %s3
  %s6 = scalar_select 0, %s5, %s3
  $region1: #{tpu_custom_call.1} parent=0
    #allocation2 [shape = 'u8[4096]{0}', space=vmem, size = 0x1000, scoped, tag = 'input window, operand 0, single buffered']
    #allocation3 [shape = 's32[1]{0}', space=sflag, size = 0x4, scoped, tag = 'scoped memory for tpu_custom_call.1']
    #allocation4 [shape = 's32[1]{0}', space=sflag, size = 0x4, scoped, tag = 'scoped memory for tpu_custom_call.1']
    #allocation5 [shape = 'u8[53248]{0}', space=vmem, size = 0xd000, scoped, tag = 'input window, operand 1, single buffered']
    #allocation6 [shape = 's32[1]{0}', space=sflag, size = 0x4, scoped, tag = 'scoped memory for tpu_custom_call.1']
    #allocation7 [shape = 'u8[4096]{0}', space=vmem, size = 0x1000, scoped, tag = 'output window, operand 0, single buffered']
    %7 = vsyncpa [#allocation3], 0
    %8 = vsyncpa [#allocation6], 0
    %9 = vsyncpa [#allocation4], 0
    // Predicated region
    $region2: #{tpu_custom_call.1} parent=1 // pred_check
      _
    $region3: #{tpu_custom_call.1} parent=1 // pred_check_branch
      %11 = sbr.rel (0) target = $region5
    $region4: #{tpu_custom_call.1} parent=1 // pred_region
      %s13 = ssub.s32 128, 128
      %14 = vsyncadd [#allocation3], %s13
      %s16 = sshll.u32 [#allocation2], 4
      %s17 = int_to_ptr.vmem [resolvable:$true] %s16
      %19 = dma.hbm_to_vmem [thread:$0]  %s0, 128, %s17, [#allocation3]
    $region5: #{tpu_custom_call.1} parent=1 // pred_fallthru
      _
    // Predicated region
    $region6: #{tpu_custom_call.1} parent=1 // pred_check
      _
    $region7: #{tpu_custom_call.1} parent=1 // pred_check_branch
      %21 = sbr.rel (0) target = $region9
    $region8: #{tpu_custom_call.1} parent=1 // pred_region
      %s23 = ssub.s32 1664, 1664
      %24 = vsyncadd [#allocation6], %s23
      %s25 = sshll.u32 [#allocation5], 4
      %s26 = int_to_ptr.vmem [resolvable:$true] %s25
      %31 = dma.hbm_to_vmem [thread:$0]  %s1, 1664, %s26, [#allocation6], 128, 128, 8
    $region9: #{tpu_custom_call.1} parent=1 // pred_fallthru
      _
    // Predicated region
    $region10: #{tpu_custom_call.1} parent=1 // pred_check
      _
    $region11: #{tpu_custom_call.1} parent=1 // pred_check_branch
      %33 = sbr.rel (0) target = $region13
    $region12: #{tpu_custom_call.1} parent=1 // pred_region
      %34 = dma.done [#allocation3], 128
    $region13: #{tpu_custom_call.1} parent=1 // pred_fallthru
      _
    // Predicated region
    $region14: #{tpu_custom_call.1} parent=1 // pred_check
      _
    $region15: #{tpu_custom_call.1} parent=1 // pred_check_branch
      %36 = sbr.rel (0) target = $region17
    $region16: #{tpu_custom_call.1} parent=1 // pred_region
      %37 = dma.done [#allocation6], 1664
    $region17: #{tpu_custom_call.1} parent=1 // pred_fallthru
      _
    %v38 = vld [vmem:[#allocation2] sm:$0xff]
    %v39 = vld [vmem:[#allocation5] sm:$0xff]
    %v40 = vld [vmem:[#allocation5 + $0x8] sm:$0xff]
    %v41 = vld [vmem:[#allocation5 + $0x10] sm:$0x1]
    %v42 = vld [vmem:[#allocation5 + $0x18] sm:$0xff]
    %v43 = vld [vmem:[#allocation5 + $0x20] sm:$0xff]
    %v44 = vld [vmem:[#allocation5 + $0x28] sm:$0xff]
    %v45 = vld [vmem:[#allocation5 + $0x30] sm:$0xff]
    %v46 = vld [vmem:[#allocation5 + $0x38] sm:$0x1]
    %v47 = vld [vmem:[#allocation5 + $0x40] sm:$0xff]
    %v48 = vld [vmem:[#allocation5 + $0x48] sm:$0xff]
    %v49 = vld [vmem:[#allocation5 + $0x50] sm:$0xff]
    %v50 = vld [vmem:[#allocation5 + $0x58] sm:$0xff]
    %v51 = vld [vmem:[#allocation5 + $0x60] sm:$0x1]
    %v52 = vlaneseq
    %v53 = vshrl.u32 %v52, 7
    %v54 = vsub.s32 0, %v53
    %v55 = vrot.slane %v41, %v54
    %vm56 = vcmask 130048
    %v58 = vsel %vm56, %v38, 0
    %60 = vmatprep.subr.mxu0 0.0
    %61 = vmatpush1.msra.mxu0 0.0
    %62 = vmatprep.subr.mxu0 0.0
    %63 = vmatpush1.msra.mxu0 0.0
    %64 = vmatprep.subr.mxu0 0.0
    %65 = vmatpush1.msra.mxu0 0.0
    %66 = vmatprep.subr.mxu0 0.0
    %67 = vmatpush1.msra.mxu0 0.0
    %68 = vmatprep.subr.mxu0 0.0
    %69 = vmatpush1.msra.mxu0 0.0
    %70 = vmatprep.subr.mxu0 0.0
    %71 = vmatpush1.msra.mxu0 0.0
    %72 = vmatprep.subr.mxu0 0.0
    %73 = vmatpush1.msra.mxu0 0.0
    %74 = vmatprep.subr.mxu0 0.0
    %75 = vmatpush1.msra.mxu0 0.0
    %76 = vmatprep.subr.mxu0 0.0
    %77 = vmatpush1.msra.mxu0 0.0
    %78 = vmatprep.subr.mxu0 0.0
    %79 = vmatpush1.msra.mxu0 0.0
    %80 = vmatprep.subr.mxu0 0.0
    %81 = vmatpush1.msra.mxu0 0.0
    %82 = vmatprep.subr.mxu0 0.0
    %83 = vmatpush1.msra.mxu0 0.0
    %84 = vmatprep.subr.mxu0 0.0
    %85 = vmatpush1.msra.mxu0 0.0
    %86 = vmatprep.subr.mxu0 0.0
    %87 = vmatpush1.msra.mxu0 0.0
    %88 = vmatprep.subr.mxu0 0.0
    %89 = vmatpush1.msra.mxu0 %v40
    %90 = vmatprep.subr.mxu0 0.0
    %91 = vmatpush1.msra.mxu0 %v39
    %92 = vmatprep.subr.mxu0 0.0
    %93 = vmatpush2.msra.mxu0 0.0
    %94 = vmatprep.subr.mxu0 0.0
    %95 = vmatpush2.msra.mxu0 0.0
    %96 = vmatprep.subr.mxu0 0.0
    %97 = vmatpush2.msra.mxu0 0.0
    %98 = vmatprep.subr.mxu0 0.0
    %99 = vmatpush2.msra.mxu0 0.0
    %100 = vmatprep.subr.mxu0 0.0
    %101 = vmatpush2.msra.mxu0 0.0
    %102 = vmatprep.subr.mxu0 0.0
    %103 = vmatpush2.msra.mxu0 0.0
    %104 = vmatprep.subr.mxu0 0.0
    %105 = vmatpush2.msra.mxu0 0.0
    %106 = vmatprep.subr.mxu0 0.0
    %107 = vmatpush2.msra.mxu0 0.0
    %108 = vmatprep.subr.mxu0 0.0
    %109 = vmatpush2.msra.mxu0 0.0
    %110 = vmatprep.subr.mxu0 0.0
    %111 = vmatpush2.msra.mxu0 0.0
    %112 = vmatprep.subr.mxu0 0.0
    %113 = vmatpush2.msra.mxu0 0.0
    %114 = vmatprep.subr.mxu0 0.0
    %115 = vmatpush2.msra.mxu0 0.0
    %116 = vmatprep.subr.mxu0 0.0
    %117 = vmatpush2.msra.mxu0 0.0
    %118 = vmatprep.subr.mxu0 0.0
    %119 = vmatpush2.msra.mxu0 0.0
    %120 = vmatprep.subr.mxu0 0.0
    %121 = vmatpush2.msra.mxu0 0.0
    %122 = vmatprep.subr.mxu0 0.0
    %123 = vmatpush2.msra.mxu0 0.0
    %124 = vmatprep.mubr.f32.mxu0 0.0
    %125 = vmatmul.mubr.f32.gmra.mxu0 %v58
    %v126 = vpop.f32.mrf.mxu0
    %v127 = vadd.f32 %v55, %v126
    %v128 = vpop.f32.mrf.mxu0
    %129 = vdwg.mxu0
    %v130 = vmax.f32 %v127, 0.0
    %v131 = vlaneseq
    %v132 = vshrl.u32 %v131, 7
    %v133 = vsub.s32 0, %v132
    %v134 = vrot.slane %v46, %v133
    %vm135 = vcmask 261120
    %v137 = vsel %vm135, %v130, 0
    %139 = vmatprep.subr.mxu0 0.0
    %140 = vmatpush1.msra.mxu0 0.0
    %141 = vmatprep.subr.mxu0 0.0
    %142 = vmatpush1.msra.mxu0 0.0
    %143 = vmatprep.subr.mxu0 0.0
    %144 = vmatpush1.msra.mxu0 0.0
    %145 = vmatprep.subr.mxu0 0.0
    %146 = vmatpush1.msra.mxu0 0.0
    %147 = vmatprep.subr.mxu0 0.0
    %148 = vmatpush1.msra.mxu0 0.0
    %149 = vmatprep.subr.mxu0 0.0
    %150 = vmatpush1.msra.mxu0 0.0
    %151 = vmatprep.subr.mxu0 0.0
    %152 = vmatpush1.msra.mxu0 0.0
    %153 = vmatprep.subr.mxu0 0.0
    %154 = vmatpush1.msra.mxu0 0.0
    %155 = vmatprep.subr.mxu0 0.0
    %156 = vmatpush1.msra.mxu0 0.0
    %157 = vmatprep.subr.mxu0 0.0
    %158 = vmatpush1.msra.mxu0 0.0
    %159 = vmatprep.subr.mxu0 0.0
    %160 = vmatpush1.msra.mxu0 0.0
    %161 = vmatprep.subr.mxu0 0.0
    %162 = vmatpush1.msra.mxu0 0.0
    %163 = vmatprep.subr.mxu0 0.0
    %164 = vmatpush1.msra.mxu0 %v45
    %165 = vmatprep.subr.mxu0 0.0
    %166 = vmatpush1.msra.mxu0 %v44
    %167 = vmatprep.subr.mxu0 0.0
    %168 = vmatpush1.msra.mxu0 %v43
    %169 = vmatprep.subr.mxu0 0.0
    %170 = vmatpush1.msra.mxu0 %v42
    %171 = vmatprep.subr.mxu0 0.0
    %172 = vmatpush2.msra.mxu0 0.0
    %173 = vmatprep.subr.mxu0 0.0
    %174 = vmatpush2.msra.mxu0 0.0
    %175 = vmatprep.subr.mxu0 0.0
    %176 = vmatpush2.msra.mxu0 0.0
    %177 = vmatprep.subr.mxu0 0.0
    %178 = vmatpush2.msra.mxu0 0.0
    %179 = vmatprep.subr.mxu0 0.0
    %180 = vmatpush2.msra.mxu0 0.0
    %181 = vmatprep.subr.mxu0 0.0
    %182 = vmatpush2.msra.mxu0 0.0
    %183 = vmatprep.subr.mxu0 0.0
    %184 = vmatpush2.msra.mxu0 0.0
    %185 = vmatprep.subr.mxu0 0.0
    %186 = vmatpush2.msra.mxu0 0.0
    %187 = vmatprep.subr.mxu0 0.0
    %188 = vmatpush2.msra.mxu0 0.0
    %189 = vmatprep.subr.mxu0 0.0
    %190 = vmatpush2.msra.mxu0 0.0
    %191 = vmatprep.subr.mxu0 0.0
    %192 = vmatpush2.msra.mxu0 0.0
    %193 = vmatprep.subr.mxu0 0.0
    %194 = vmatpush2.msra.mxu0 0.0
    %195 = vmatprep.subr.mxu0 0.0
    %196 = vmatpush2.msra.mxu0 0.0
    %197 = vmatprep.subr.mxu0 0.0
    %198 = vmatpush2.msra.mxu0 0.0
    %199 = vmatprep.subr.mxu0 0.0
    %200 = vmatpush2.msra.mxu0 0.0
    %201 = vmatprep.subr.mxu0 0.0
    %202 = vmatpush2.msra.mxu0 0.0
    %203 = vmatprep.mubr.f32.mxu0 0.0
    %204 = vmatmul.mubr.f32.gmra.mxu0 %v137
    %v205 = vpop.f32.mrf.mxu0
    %v206 = vadd.f32 %v134, %v205
    %v207 = vpop.f32.mrf.mxu0
    %208 = vdwg.mxu0
    %v209 = vmax.f32 %v206, 0.0
    %v210 = vlaneseq
    %v211 = vshrl.u32 %v210, 7
    %v212 = vsub.s32 0, %v211
    %v213 = vrot.slane %v51, %v212
    %v215 = vsel %vm135, %v209, 0
    %217 = vmatprep.subr.mxu0 0.0
    %218 = vmatpush1.msra.mxu0 0.0
    %219 = vmatprep.subr.mxu0 0.0
    %220 = vmatpush1.msra.mxu0 0.0
    %221 = vmatprep.subr.mxu0 0.0
    %222 = vmatpush1.msra.mxu0 0.0
    %223 = vmatprep.subr.mxu0 0.0
    %224 = vmatpush1.msra.mxu0 0.0
    %225 = vmatprep.subr.mxu0 0.0
    %226 = vmatpush1.msra.mxu0 0.0
    %227 = vmatprep.subr.mxu0 0.0
    %228 = vmatpush1.msra.mxu0 0.0
    %229 = vmatprep.subr.mxu0 0.0
    %230 = vmatpush1.msra.mxu0 0.0
    %231 = vmatprep.subr.mxu0 0.0
    %232 = vmatpush1.msra.mxu0 0.0
    %233 = vmatprep.subr.mxu0 0.0
    %234 = vmatpush1.msra.mxu0 0.0
    %235 = vmatprep.subr.mxu0 0.0
    %236 = vmatpush1.msra.mxu0 0.0
    %237 = vmatprep.subr.mxu0 0.0
    %238 = vmatpush1.msra.mxu0 0.0
    %239 = vmatprep.subr.mxu0 0.0
    %240 = vmatpush1.msra.mxu0 0.0
    %241 = vmatprep.subr.mxu0 0.0
    %242 = vmatpush1.msra.mxu0 %v50
    %243 = vmatprep.subr.mxu0 0.0
    %244 = vmatpush1.msra.mxu0 %v49
    %245 = vmatprep.subr.mxu0 0.0
    %246 = vmatpush1.msra.mxu0 %v48
    %247 = vmatprep.subr.mxu0 0.0
    %248 = vmatpush1.msra.mxu0 %v47
    %249 = vmatprep.subr.mxu0 0.0
    %250 = vmatpush2.msra.mxu0 0.0
    %251 = vmatprep.subr.mxu0 0.0
    %252 = vmatpush2.msra.mxu0 0.0
    %253 = vmatprep.subr.mxu0 0.0
    %254 = vmatpush2.msra.mxu0 0.0
    %255 = vmatprep.subr.mxu0 0.0
    %256 = vmatpush2.msra.mxu0 0.0
    %257 = vmatprep.subr.mxu0 0.0
    %258 = vmatpush2.msra.mxu0 0.0
    %259 = vmatprep.subr.mxu0 0.0
    %260 = vmatpush2.msra.mxu0 0.0
    %261 = vmatprep.subr.mxu0 0.0
    %262 = vmatpush2.msra.mxu0 0.0
    %263 = vmatprep.subr.mxu0 0.0
    %264 = vmatpush2.msra.mxu0 0.0
    %265 = vmatprep.subr.mxu0 0.0
    %266 = vmatpush2.msra.mxu0 0.0
    %267 = vmatprep.subr.mxu0 0.0
    %268 = vmatpush2.msra.mxu0 0.0
    %269 = vmatprep.subr.mxu0 0.0
    %270 = vmatpush2.msra.mxu0 0.0
    %271 = vmatprep.subr.mxu0 0.0
    %272 = vmatpush2.msra.mxu0 0.0
    %273 = vmatprep.subr.mxu0 0.0
    %274 = vmatpush2.msra.mxu0 0.0
    %275 = vmatprep.subr.mxu0 0.0
    %276 = vmatpush2.msra.mxu0 0.0
    %277 = vmatprep.subr.mxu0 0.0
    %278 = vmatpush2.msra.mxu0 0.0
    %279 = vmatprep.subr.mxu0 0.0
    %280 = vmatpush2.msra.mxu0 0.0
    %281 = vmatprep.mubr.f32.mxu0 0.0
    %282 = vmatmul.mubr.f32.gmra.mxu0 %v215
    %v283 = vpop.f32.mrf.mxu0
    %v284 = vadd.f32 %v213, %v283
    %v285 = vpop.f32.mrf.mxu0
    %286 = vdwg.mxu0
    %v287 = vlaneseq
    %v288 = vand.u32 %v287, 127
    %vm289 = vcmp.lt.s32.totalorder %v288, 4
    %v290 = vsel %vm289, %v284, 0.0
    %291 = vadd.xlane.f32.xlu0 %v290
    %v292 = vpop.xlane.xlu0 %291
    %v293 = vmul.f32 %v292, 0.25
    %vm294 = vcmp.eq.s32.totalorder %v288, 4
    %v295 = vsel %vm294, %v284, 0.0
    %296 = vadd.xlane.f32.xlu0 %v295
    %v297 = vpop.xlane.xlu0 %296
    %v298 = vsub.f32 %v297, %v293
    %v299 = vadd.f32 %v284, %v298
    %v300 = vsel %vm289, %v299, 0.0
    %301 = vst [vmem:[#allocation7] sm:$0xff] %v300
    // Predicated region
    $region18: #{tpu_custom_call.1} parent=1 // pred_check
      _
    $region19: #{tpu_custom_call.1} parent=1 // pred_check_branch
      %303 = sbr.rel (0) target = $region21
    $region20: #{tpu_custom_call.1} parent=1 // pred_region
      %s305 = ssub.s32 128, 128
      %306 = vsyncadd [#allocation4], %s305
      %s308 = sshll.u32 [#allocation7], 4
      %s309 = int_to_ptr.vmem [resolvable:$true] %s308
      %311 = dma.vmem_to_hbm [thread:$0]  %s309, 128, %s2, [#allocation4]
    $region21: #{tpu_custom_call.1} parent=1 // pred_fallthru
      _
    // Predicated region
    $region22: #{tpu_custom_call.1} parent=1 // pred_check
      _
    $region23: #{tpu_custom_call.1} parent=1 // pred_check_branch
      %313 = sbr.rel (0) target = $region25
    $region24: #{tpu_custom_call.1} parent=1 // pred_region
      %314 = dma.done [#allocation4], 128
    $region25: #{tpu_custom_call.1} parent=1 // pred_fallthru
      _
    %315 = vsyncpa [#allocation3], 1
    %316 = vsyncpa [#allocation6], 1
    %317 = vsyncpa [#allocation4], 1

</llo_original>
